<compile_context>
chip_gen: v5e
topology: v5e:2x2
jax: 0.10.0
libtpu: 0.0.40
codegen_flags: <defaults>
</compile_context>

<pallas_src>
from functools import partial

import jax
import jax.numpy as jnp
from jax.experimental import pallas as pl
from jax.experimental.pallas import tpu as pltpu

_LANE = 128
_SUBLANE = 8


def _round_up(n, m):
    return ((n + m - 1) // m) * m


def _make_housenet_kernel(activations):
    """Builds a fused-MLP kernel body for the given activation sequence."""

    def kernel(*refs):
        # refs = (x_ref, w0_ref, b0_ref, w1_ref, b1_ref, ..., o_ref)
        x_ref = refs[0]
        o_ref = refs[-1]
        h = x_ref[...]                               # f32 (TB, d0_pad)
        for i, act in enumerate(activations):
            w = refs[1 + 2 * i][...]                 # bf16 (d_in_pad, d_out_pad), resident
            b = refs[2 + 2 * i][...]                 # f32  (1, d_out_pad) -> broadcasts
            # bf16 MXU matmul with f32 accumulation; bias/activation in f32.
            h = jnp.dot(h.astype(jnp.bfloat16), w,
                        preferred_element_type=jnp.float32) + b
            if act == 'ReLU':
                h = jnp.maximum(h, 0.0)
            elif act == 'Sigmoid':
                h = jax.nn.sigmoid(h)                # EUP exp; padded lanes give 0.5,
                                                     # killed by next layer's zero rows.
            elif act == 'Id':
                pass
            else:
                raise ValueError(f"unknown activation {act}")
        o_ref[...] = h.astype(o_ref.dtype)

    return kernel


def housenet_forward(x, params, activations, *, tile_batch=256):
    """Run the fused HouseNet forward pass in a single pallas_call.

    x:       (B, input_) float32
    params:  list of (W, b) with W: (in, out) float32, b: (1, out) float32
    Returns: (B, out) float32
    """
    B, in_dim = x.shape
    n_layers = len(params)
    assert n_layers == len(activations)

    # Padded feature dims (lane-dense: multiples of 128).  dims[i] feeds layer i.
    dims = [in_dim] + [W.shape[1] for W, _ in params]
    dims_pad = [_round_up(d, _LANE) for d in dims]

    # Batch tile: multiple of 8 sublanes, capped at tile_batch; pad B up to a multiple.
    TB = min(_round_up(tile_batch, _SUBLANE), _round_up(B, _SUBLANE))
    B_pad = _round_up(B, TB)

    # Zero-pad x; zero rows/cols are harmless since padded weight rows are zero.
    x_pad = jnp.zeros((B_pad, dims_pad[0]), jnp.float32).at[:B, :in_dim].set(x)

    flat_args = [x_pad]
    in_specs = [pl.BlockSpec((TB, dims_pad[0]), lambda i: (i, 0))]
    for li, (W, b) in enumerate(params):
        d_in, d_out = W.shape
        # Weights stored bf16 (halves DMA bytes and resident VMEM), zero-padded.
        W_pad = jnp.zeros((dims_pad[li], dims_pad[li + 1]), jnp.bfloat16)
        W_pad = W_pad.at[:d_in, :d_out].set(W.astype(jnp.bfloat16))
        b_pad = jnp.zeros((1, dims_pad[li + 1]), jnp.float32).at[:, :d_out].set(b)
        flat_args.append(W_pad)
        in_specs.append(pl.BlockSpec(W_pad.shape, lambda i: (0, 0)))  # resident weights
        flat_args.append(b_pad)
        in_specs.append(pl.BlockSpec(b_pad.shape, lambda i: (0, 0)))

    out_pad_dim = dims_pad[-1]

    # Explicit VMEM budget: double-buffered x/out tiles + resident weights/biases
    # + slack for f32 intermediates.  Clamped to stay within v7x's 64 MiB physical.
    weight_bytes = sum(dims_pad[i] * dims_pad[i + 1] * 2 + dims_pad[i + 1] * 4
                       for i in range(n_layers))
    act_bytes = 2 * TB * dims_pad[0] * 4 + 2 * TB * out_pad_dim * 4
    scratch_bytes = 4 * TB * max(dims_pad) * 4
    est = 2 * weight_bytes + act_bytes + scratch_bytes
    vmem_limit = int(min(48 * 1024 * 1024, max(32 * 1024 * 1024, 2 * est)))

    kernel = _make_housenet_kernel(activations)

    out = pl.pallas_call(
        kernel,
        grid=(B_pad // TB,),
        in_specs=in_specs,
        out_specs=pl.BlockSpec((TB, out_pad_dim), lambda i: (i, 0)),
        out_shape=jax.ShapeDtypeStruct((B_pad, out_pad_dim), jnp.float32),
        compiler_params=pltpu.CompilerParams(
            dimension_semantics=("parallel",),     # shard batch tiles across v7x cores
            vmem_limit_bytes=vmem_limit),
    )(*flat_args)

    # Slice off batch padding and padded output lanes.
    return out[:B, :dims[-1]]


def init_housenet_params(key, input_, neurons, out=1):
    """Deterministic init mimicking nn.Linear's U(-1/sqrt(fan_in), 1/sqrt(fan_in))."""
    dims_in = [input_, *neurons]
    dims_out = [*neurons, out]
    params = []
    for d_in, d_out in zip(dims_in, dims_out):
        key, kw, kb = jax.random.split(key, 3)
        bound = 1.0 / jnp.sqrt(d_in)
        # PyTorch stores (out, in); we store the transpose (in, out) for x @ W.
        W = jax.random.uniform(kw, (d_in, d_out), jnp.float32, -bound, bound)
        b = jax.random.uniform(kb, (1, d_out), jnp.float32, -bound, bound)
        params.append((W, b))
    return params


def housenet_ref(x, params, activations):
    """Pure-JAX f32 reference for correctness checking."""
    h = x
    for (W, b), act in zip(params, activations):
        h = h @ W + b
        if act == 'ReLU':
            h = jnp.maximum(h, 0.0)
        elif act == 'Sigmoid':
            h = jax.nn.sigmoid(h)
    return h


if __name__ == "__main__":
    # Small HouseNet config: input_=32, neurons=[64, 32], out=1,
    # one activation per Linear layer.  batch=70 (non-multiple of the tile) and
    # tile_batch=32 exercise batch tiling + padding (grid of 3 steps).
    input_ = 32
    neurons = [64, 32]
    out = 1
    activations = ['ReLU', 'Sigmoid', 'Id']
    batch = 70

    key = jax.random.PRNGKey(0)
    key, kx = jax.random.split(key)
    x = jax.random.normal(kx, (batch, input_), jnp.float32)
    params = init_housenet_params(key, input_, neurons, out)

    y = housenet_forward(x, params, activations, tile_batch=32)
    y = jax.block_until_ready(y)

    y_ref = housenet_ref(x, params, activations)
    assert y.shape == (batch, out)
    # Tolerance loosened vs the f32 reference since matmul inputs are bf16
    # (accumulation stays f32).
    assert jnp.allclose(y, y_ref, atol=2e-2, rtol=2e-2), "mismatch vs reference"

    print("KERNEL_OK")
</pallas_src>

<mosaic_0001>
module attributes {stable_mosaic.version = 11 : i64} {
  func.func @kernel(%arg0: i32, %arg1: memref<32x128xf32, #tpu.memory_space<vmem>>, %arg2: memref<128x128xbf16, #tpu.memory_space<vmem>>, %arg3: memref<1x128xf32, #tpu.memory_space<vmem>>, %arg4: memref<128x128xbf16, #tpu.memory_space<vmem>>, %arg5: memref<1x128xf32, #tpu.memory_space<vmem>>, %arg6: memref<128x128xbf16, #tpu.memory_space<vmem>>, %arg7: memref<1x128xf32, #tpu.memory_space<vmem>>, %arg8: memref<32x128xf32, #tpu.memory_space<vmem>>) attributes {dimension_semantics = [#tpu.dimension_semantics<parallel>], iteration_bounds = array<i64: 3>, scalar_prefetch = 0 : i64, scratch_operands = 0 : i64, tpu.core_type = #tpu.core_type<tc>, window_params = [{transform_indices = @transform_0, window_bounds = array<i64: 32, 128>}, {pipeline_mode = #tpu.pipeline_mode<synchronous>, transform_indices = @transform_1, window_bounds = array<i64: 128, 128>}, {pipeline_mode = #tpu.pipeline_mode<synchronous>, transform_indices = @transform_2, window_bounds = array<i64: 1, 128>}, {pipeline_mode = #tpu.pipeline_mode<synchronous>, transform_indices = @transform_3, window_bounds = array<i64: 128, 128>}, {pipeline_mode = #tpu.pipeline_mode<synchronous>, transform_indices = @transform_4, window_bounds = array<i64: 1, 128>}, {pipeline_mode = #tpu.pipeline_mode<synchronous>, transform_indices = @transform_5, window_bounds = array<i64: 128, 128>}, {pipeline_mode = #tpu.pipeline_mode<synchronous>, transform_indices = @transform_6, window_bounds = array<i64: 1, 128>}, {transform_indices = @transform_7, window_bounds = array<i64: 32, 128>}]} {
    %c0 = arith.constant 0 : index
    %c0_0 = arith.constant 0 : index
    %0 = vector.load %arg1[%c0, %c0_0] : memref<32x128xf32, #tpu.memory_space<vmem>>, vector<32x128xf32>
    %c0_1 = arith.constant 0 : index
    %c0_2 = arith.constant 0 : index
    %1 = vector.load %arg2[%c0_1, %c0_2] : memref<128x128xbf16, #tpu.memory_space<vmem>>, vector<128x128xbf16>
    %c0_3 = arith.constant 0 : index
    %c0_4 = arith.constant 0 : index
    %2 = vector.load %arg3[%c0_3, %c0_4] : memref<1x128xf32, #tpu.memory_space<vmem>>, vector<1x128xf32>
    %3 = arith.truncf %0 : vector<32x128xf32> to vector<32x128xbf16>
    %cst = arith.constant dense<0.000000e+00> : vector<32x128xf32>
    %4 = tpu.matmul %3, %1, %cst {dimension_numbers = #tpu.dot_dimension_numbers<[1], [0], [0], [1], [0, 0, 1, 1], [], []>} : vector<32x128xbf16>, vector<128x128xbf16>, vector<32x128xf32> -> vector<32x128xf32>
    %5 = vector.broadcast %2 : vector<1x128xf32> to vector<32x128xf32>
    %6 = arith.addf %4, %5 : vector<32x128xf32>
    %cst_5 = arith.constant 0.000000e+00 : f32
    %7 = vector.broadcast %cst_5 : f32 to vector<32x128xf32>
    %8 = arith.maximumf %6, %7 : vector<32x128xf32>
    %c0_6 = arith.constant 0 : index
    %c0_7 = arith.constant 0 : index
    %9 = vector.load %arg4[%c0_6, %c0_7] : memref<128x128xbf16, #tpu.memory_space<vmem>>, vector<128x128xbf16>
    %c0_8 = arith.constant 0 : index
    %c0_9 = arith.constant 0 : index
    %10 = vector.load %arg5[%c0_8, %c0_9] : memref<1x128xf32, #tpu.memory_space<vmem>>, vector<1x128xf32>
    %11 = arith.truncf %8 : vector<32x128xf32> to vector<32x128xbf16>
    %cst_10 = arith.constant dense<0.000000e+00> : vector<32x128xf32>
    %12 = tpu.matmul %11, %9, %cst_10 {dimension_numbers = #tpu.dot_dimension_numbers<[1], [0], [0], [1], [0, 0, 1, 1], [], []>} : vector<32x128xbf16>, vector<128x128xbf16>, vector<32x128xf32> -> vector<32x128xf32>
    %13 = vector.broadcast %10 : vector<1x128xf32> to vector<32x128xf32>
    %14 = arith.addf %12, %13 : vector<32x128xf32>
    %15 = arith.negf %14 : vector<32x128xf32>
    %16 = math.exp %15 : vector<32x128xf32>
    %cst_11 = arith.constant 1.000000e+00 : f32
    %17 = vector.broadcast %cst_11 : f32 to vector<32x128xf32>
    %18 = arith.addf %17, %16 : vector<32x128xf32>
    %19 = arith.divf %17, %18 : vector<32x128xf32>
    %c0_12 = arith.constant 0 : index
    %c0_13 = arith.constant 0 : index
    %20 = vector.load %arg6[%c0_12, %c0_13] : memref<128x128xbf16, #tpu.memory_space<vmem>>, vector<128x128xbf16>
    %c0_14 = arith.constant 0 : index
    %c0_15 = arith.constant 0 : index
    %21 = vector.load %arg7[%c0_14, %c0_15] : memref<1x128xf32, #tpu.memory_space<vmem>>, vector<1x128xf32>
    %22 = arith.truncf %19 : vector<32x128xf32> to vector<32x128xbf16>
    %cst_16 = arith.constant dense<0.000000e+00> : vector<32x128xf32>
    %23 = tpu.matmul %22, %20, %cst_16 {dimension_numbers = #tpu.dot_dimension_numbers<[1], [0], [0], [1], [0, 0, 1, 1], [], []>} : vector<32x128xbf16>, vector<128x128xbf16>, vector<32x128xf32> -> vector<32x128xf32>
    %24 = vector.broadcast %21 : vector<1x128xf32> to vector<32x128xf32>
    %25 = arith.addf %23, %24 : vector<32x128xf32>
    %c0_17 = arith.constant 0 : index
    %c0_18 = arith.constant 0 : index
    %26 = vector.load %arg8[%c0_17, %c0_18] : memref<32x128xf32, #tpu.memory_space<vmem>>, vector<32x128xf32>
    tpu.vector_store %arg8[%c0_17, %c0_18], %25 {strides = array<i32>} : memref<32x128xf32, #tpu.memory_space<vmem>>, vector<32x128xf32>,
    return
  }
  func.func @transform_0(%arg0: i32) -> (i32, i32) {
    %c0_i32 = arith.constant 0 : i32
    %c0_i32_0 = arith.constant 0 : i32
    return %arg0, %c0_i32 : i32, i32
  }
  func.func @transform_1(%arg0: i32) -> (i32, i32) {
    %c0_i32 = arith.constant 0 : i32
    %c0_i32_0 = arith.constant 0 : i32
    %c0_i32_1 = arith.constant 0 : i32
    return %c0_i32, %c0_i32_0 : i32, i32
  }
  func.func @transform_2(%arg0: i32) -> (i32, i32) {
    %c0_i32 = arith.constant 0 : i32
    %c0_i32_0 = arith.constant 0 : i32
    %c0_i32_1 = arith.constant 0 : i32
    return %c0_i32, %c0_i32_0 : i32, i32
  }
  func.func @transform_3(%arg0: i32) -> (i32, i32) {
    %c0_i32 = arith.constant 0 : i32
    %c0_i32_0 = arith.constant 0 : i32
    %c0_i32_1 = arith.constant 0 : i32
    return %c0_i32, %c0_i32_0 : i32, i32
  }
  func.func @transform_4(%arg0: i32) -> (i32, i32) {
    %c0_i32 = arith.constant 0 : i32
    %c0_i32_0 = arith.constant 0 : i32
    %c0_i32_1 = arith.constant 0 : i32
    return %c0_i32, %c0_i32_0 : i32, i32
  }
  func.func @transform_5(%arg0: i32) -> (i32, i32) {
    %c0_i32 = arith.constant 0 : i32
    %c0_i32_0 = arith.constant 0 : i32
    %c0_i32_1 = arith.constant 0 : i32
    return %c0_i32, %c0_i32_0 : i32, i32
  }
  func.func @transform_6(%arg0: i32) -> (i32, i32) {
    %c0_i32 = arith.constant 0 : i32
    %c0_i32_0 = arith.constant 0 : i32
    %c0_i32_1 = arith.constant 0 : i32
    return %c0_i32, %c0_i32_0 : i32, i32
  }
  func.func @transform_7(%arg0: i32) -> (i32, i32) {
    %c0_i32 = arith.constant 0 : i32
    %c0_i32_0 = arith.constant 0 : i32
    return %arg0, %c0_i32 : i32, i32
  }
}

</mosaic_0001>

<llo_original>
// kernel: tpu_custom_call.1
$region0: #{tpu_custom_call.1}
  #allocation0 [shape = 'u32[]', space=smem, size = 0x4, offset = 0x4, fixed_abs, tag = 'smem constant byte address 0x4 - core index']
  #allocation1 [shape = 'u32[72,128]{1,0:T(1,128)}', space=vmem, size = 0x9000, scoped, tag = 'internal scratch']
  %s0 = inlined_call_operand.hbm [shape: f32[96,128], index: 0, kind: input, shape index: {}]
  %s1 = inlined_call_operand.hbm [shape: bf16[128,128], index: 1, kind: input, shape index: {}]
  %s2 = inlined_call_operand.vmem [shape: f32[1,128], index: 2, kind: input, shape index: {}]
  %s3 = inlined_call_operand.hbm [shape: bf16[128,128], index: 3, kind: input, shape index: {}]
  %s4 = inlined_call_operand.vmem [shape: f32[1,128], index: 4, kind: input, shape index: {}]
  %s5 = inlined_call_operand.hbm [shape: bf16[128,128], index: 5, kind: input, shape index: {}]
  %s6 = inlined_call_operand.vmem [shape: f32[1,128], index: 6, kind: input, shape index: {}]
  %s7 = inlined_call_operand.hbm [shape: f32[96,128], index: 7, kind: output, shape index: {}]
  %s8 = sld [smem:[#allocation0]]
  $region77: #{tpu_custom_call.1} parent=0
    _
  %s10 = ssub.s32 1, %s8
  %s11 = scalar_select 0, %s10, %s8
  $region1: #{tpu_custom_call.1} parent=0
    #allocation2 [shape = 'u8[32768]{0}', space=vmem, size = 0x8000, scoped, tag = 'input window, operand 0']
    #allocation3 [shape = 's32[2]{0}', space=sflag, size = 0x8, scoped, tag = 'scoped memory for tpu_custom_call.1']
    #allocation4 [shape = 's32[2]{0}', space=sflag, size = 0x8, scoped, tag = 'scoped memory for tpu_custom_call.1']
    #allocation5 [shape = 'u8[32768]{0}', space=vmem, size = 0x8000, scoped, tag = 'input window, operand 1, single buffered']
    #allocation6 [shape = 's32[1]{0}', space=sflag, size = 0x4, scoped, tag = 'scoped memory for tpu_custom_call.1']
    #allocation7 [shape = 'u8[32768]{0}', space=vmem, size = 0x8000, scoped, tag = 'input window, operand 3, single buffered']
    #allocation8 [shape = 'u8[32768]{0}', space=vmem, size = 0x8000, scoped, tag = 'input window, operand 5, single buffered']
    #allocation9 [shape = 's32[1]{0}', space=sflag, size = 0x4, scoped, tag = 'scoped memory for tpu_custom_call.1']
    #allocation10 [shape = 'u8[32768]{0}', space=vmem, size = 0x8000, scoped, tag = 'output window, operand 0']
    %12 = vsyncpa [#allocation3], 0
    %s13 = scalar_lea.sflag [#allocation3], 1
    %14 = vsyncpa %s13, 0
    %15 = vsyncpa [#allocation6], 0
    %16 = vsyncpa [#allocation9], 0
    %17 = vsyncpa [#allocation4], 0
    %s18 = scalar_lea.sflag [#allocation4], 1
    %19 = vsyncpa %s18, 0
    loop: start=0, step=1, limit=5
    $region2: #{tpu_custom_call.1} parent=1 // loop_pre_header
      _
    $region3: #{tpu_custom_call.1} parent=1 // loop_header
      %s21 = sphi 0, %s25
      %p22 = scmp.ge.s32.totalorder %s21, 5
      %s31 = sphi 0, %s33
      %s34 = sphi 0, %s31
      %s35 = sphi 0, %s34
      %s51 = sphi 0, %s35
      %s55 = sphi 0, %s55
      %s57 = sphi 0, %s55
      %s58 = sphi 0, %s57
      %s72 = sphi 0, %s58
      %s76 = sphi 0, %s76
      %s78 = sphi 0, %s76
      %s79 = sphi 0, %s78
      %s93 = sphi 0, %s79
      %s97 = sphi 0, %s97
      %s99 = sphi 0, %s97
      %s100 = sphi 0, %s99
      %s114 = sphi 0, %s100
      %s118 = sphi 0, %s118
      %s120 = sphi 0, %s118
      %s121 = sphi 0, %s120
      %s135 = sphi 0, %s121
      %s139 = sphi 0, %s139
      %s141 = sphi 0, %s139
      %s142 = sphi 0, %s141
      %s156 = sphi 0, %s142
      %s160 = sphi 0, %s160
      %s162 = sphi 0, %s160
      %s163 = sphi 0, %s162
      %s177 = sphi 0, %s163
      %s183 = sphi 0, %s185
      %s186 = sphi 0, %s183
      %s187 = sphi 0, %s186
      %s203 = sphi 0, %s187
    $region4: #{tpu_custom_call.1} parent=1 // loop_header_branch
      %24 = sbr.rel (%p22) target = $region8
    $region5: #{tpu_custom_call.1} parent=1 // loop_body
      %s26 = ssub.s32 %s21, 1
      %s27 = ssub.s32 %s21, 2
      %s28 = sadd.s32 %s21, 1
      %s29 = ssub.s32 %s21, %s28
      %p30 = scmp.eq.s32.totalorder %s29, 0
      %s32 = sadd.s32 %s31, 1
      %s33 = scalar_select %p30, %s31, %s32
      %p36 = pneg %p30
      %p37 = scmp.eq.s32.totalorder %s21, 2
      %p38 = por %p36, %p37
      %p39 = scmp.ne.s32.totalorder %s31, %s34
      %p40 = scmp.eq.s32.totalorder %s21, 0
      %p41 = por %p39, %p40
      %p42 = scmp.ne.s32.totalorder %s31, %s34
      %p43 = scmp.eq.s32.totalorder %s26, 2
      %p44 = por %p42, %p43
      %p45 = scmp.ne.s32.totalorder %s34, %s35
      %p46 = scmp.eq.s32.totalorder %s26, 0
      %p47 = por %p45, %p46
      %p48 = scmp.ne.s32.totalorder %s34, %s35
      %p49 = scmp.eq.s32.totalorder %s27, 2
      %p50 = por %p48, %p49
      %p52 = scmp.ne.s32.totalorder %s35, %s51
      %p53 = scmp.eq.s32.totalorder %s27, 0
      %p54 = por %p52, %p53
      %s56 = sadd.s32 %s55, 1
      %p59 = scmp.eq.s32.totalorder %s21, 2
      %p60 = scmp.ne.s32.totalorder %s55, %s57
      %p61 = scmp.eq.s32.totalorder %s21, 0
      %p62 = por %p60, %p61
      %p63 = scmp.ne.s32.totalorder %s55, %s57
      %p64 = scmp.eq.s32.totalorder %s26, 2
      %p65 = por %p63, %p64
      %p66 = scmp.ne.s32.totalorder %s57, %s58
      %p67 = scmp.eq.s32.totalorder %s26, 0
      %p68 = por %p66, %p67
      %p69 = scmp.ne.s32.totalorder %s57, %s58
      %p70 = scmp.eq.s32.totalorder %s27, 2
      %p71 = por %p69, %p70
      %p73 = scmp.ne.s32.totalorder %s58, %s72
      %p74 = scmp.eq.s32.totalorder %s27, 0
      %p75 = por %p73, %p74
      %s77 = sadd.s32 %s76, 1
      %p80 = scmp.eq.s32.totalorder %s21, 2
      %p81 = scmp.ne.s32.totalorder %s76, %s78
      %p82 = scmp.eq.s32.totalorder %s21, 0
      %p83 = por %p81, %p82
      %p84 = scmp.ne.s32.totalorder %s76, %s78
      %p85 = scmp.eq.s32.totalorder %s26, 2
      %p86 = por %p84, %p85
      %p87 = scmp.ne.s32.totalorder %s78, %s79
      %p88 = scmp.eq.s32.totalorder %s26, 0
      %p89 = por %p87, %p88
      %p90 = scmp.ne.s32.totalorder %s78, %s79
      %p91 = scmp.eq.s32.totalorder %s27, 2
      %p92 = por %p90, %p91
      %p94 = scmp.ne.s32.totalorder %s79, %s93
      %p95 = scmp.eq.s32.totalorder %s27, 0
      %p96 = por %p94, %p95
      %s98 = sadd.s32 %s97, 1
      %p101 = scmp.eq.s32.totalorder %s21, 2
      %p102 = scmp.ne.s32.totalorder %s97, %s99
      %p103 = scmp.eq.s32.totalorder %s21, 0
      %p104 = por %p102, %p103
      %p105 = scmp.ne.s32.totalorder %s97, %s99
      %p106 = scmp.eq.s32.totalorder %s26, 2
      %p107 = por %p105, %p106
      %p108 = scmp.ne.s32.totalorder %s99, %s100
      %p109 = scmp.eq.s32.totalorder %s26, 0
      %p110 = por %p108, %p109
      %p111 = scmp.ne.s32.totalorder %s99, %s100
      %p112 = scmp.eq.s32.totalorder %s27, 2
      %p113 = por %p111, %p112
      %p115 = scmp.ne.s32.totalorder %s100, %s114
      %p116 = scmp.eq.s32.totalorder %s27, 0
      %p117 = por %p115, %p116
      %s119 = sadd.s32 %s118, 1
      %p122 = scmp.eq.s32.totalorder %s21, 2
      %p123 = scmp.ne.s32.totalorder %s118, %s120
      %p124 = scmp.eq.s32.totalorder %s21, 0
      %p125 = por %p123, %p124
      %p126 = scmp.ne.s32.totalorder %s118, %s120
      %p127 = scmp.eq.s32.totalorder %s26, 2
      %p128 = por %p126, %p127
      %p129 = scmp.ne.s32.totalorder %s120, %s121
      %p130 = scmp.eq.s32.totalorder %s26, 0
      %p131 = por %p129, %p130
      %p132 = scmp.ne.s32.totalorder %s120, %s121
      %p133 = scmp.eq.s32.totalorder %s27, 2
      %p134 = por %p132, %p133
      %p136 = scmp.ne.s32.totalorder %s121, %s135
      %p137 = scmp.eq.s32.totalorder %s27, 0
      %p138 = por %p136, %p137
      %s140 = sadd.s32 %s139, 1
      %p143 = scmp.eq.s32.totalorder %s21, 2
      %p144 = scmp.ne.s32.totalorder %s139, %s141
      %p145 = scmp.eq.s32.totalorder %s21, 0
      %p146 = por %p144, %p145
      %p147 = scmp.ne.s32.totalorder %s139, %s141
      %p148 = scmp.eq.s32.totalorder %s26, 2
      %p149 = por %p147, %p148
      %p150 = scmp.ne.s32.totalorder %s141, %s142
      %p151 = scmp.eq.s32.totalorder %s26, 0
      %p152 = por %p150, %p151
      %p153 = scmp.ne.s32.totalorder %s141, %s142
      %p154 = scmp.eq.s32.totalorder %s27, 2
      %p155 = por %p153, %p154
      %p157 = scmp.ne.s32.totalorder %s142, %s156
      %p158 = scmp.eq.s32.totalorder %s27, 0
      %p159 = por %p157, %p158
      %s161 = sadd.s32 %s160, 1
      %p164 = scmp.eq.s32.totalorder %s21, 2
      %p165 = scmp.ne.s32.totalorder %s160, %s162
      %p166 = scmp.eq.s32.totalorder %s21, 0
      %p167 = por %p165, %p166
      %p168 = scmp.ne.s32.totalorder %s160, %s162
      %p169 = scmp.eq.s32.totalorder %s26, 2
      %p170 = por %p168, %p169
      %p171 = scmp.ne.s32.totalorder %s162, %s163
      %p172 = scmp.eq.s32.totalorder %s26, 0
      %p173 = por %p171, %p172
      %p174 = scmp.ne.s32.totalorder %s162, %s163
      %p175 = scmp.eq.s32.totalorder %s27, 2
      %p176 = por %p174, %p175
      %p178 = scmp.ne.s32.totalorder %s163, %s177
      %p179 = scmp.eq.s32.totalorder %s27, 0
      %p180 = por %p178, %p179
      %s181 = ssub.s32 %s21, %s28
      %p182 = scmp.eq.s32.totalorder %s181, 0
      %s184 = sadd.s32 %s183, 1
      %s185 = scalar_select %p182, %s183, %s184
      %p188 = pneg %p182
      %p189 = scmp.eq.s32.totalorder %s21, 2
      %p190 = por %p188, %p189
      %p191 = scmp.ne.s32.totalorder %s183, %s186
      %p192 = scmp.eq.s32.totalorder %s21, 0
      %p193 = por %p191, %p192
      %p194 = scmp.ne.s32.totalorder %s183, %s186
      %p195 = scmp.eq.s32.totalorder %s26, 2
      %p196 = por %p194, %p195
      %p197 = scmp.ne.s32.totalorder %s186, %s187
      %p198 = scmp.eq.s32.totalorder %s26, 0
      %p199 = por %p197, %p198
      %p200 = scmp.ne.s32.totalorder %s186, %s187
      %p201 = scmp.eq.s32.totalorder %s27, 2
      %p202 = por %p200, %p201
      %p204 = scmp.ne.s32.totalorder %s187, %s203
      %p205 = scmp.eq.s32.totalorder %s27, 0
      %p206 = por %p204, %p205
      %p207 = scmp.le.s32.totalorder 1, %s21
      %p208 = scmp.lt.s32.totalorder %s21, 4
      %p209 = pnand %p207, %p208
      %p210 = pneg %p209
      // Predicated region
      $region9: #{tpu_custom_call.1} parent=5 // pred_check
        _
      $region10: #{tpu_custom_call.1} parent=5 // pred_check_branch
        %212 = sbr.rel (%p209) target = $region12
      $region11: #{tpu_custom_call.1} parent=5 // pred_region
        %s213 = ssub.s32 %s21, 1
        // Predicated region
        $region13: #{tpu_custom_call.1} parent=11 // pred_check
          %p214 = pneg %p68
        $region14: #{tpu_custom_call.1} parent=11 // pred_check_branch
          %216 = sbr.rel (%p214) target = $region16
        $region15: #{tpu_custom_call.1} parent=11 // pred_region
          %218 = vsyncadd [#allocation6], 0
          %s219 = sshll.u32 %s1, 4
          %s220 = int_to_ptr.hbm [resolvable:$true] %s219
          %s221 = sshll.u32 [#allocation5], 4
          %s222 = int_to_ptr.vmem [resolvable:$true] %s221
          %227 = dma.hbm_to_vmem [thread:$0]  %s220, 1024, %s222, [#allocation6], 64, 64, 4
        $region16: #{tpu_custom_call.1} parent=11 // pred_fallthru
          _
        // Predicated region
        $region17: #{tpu_custom_call.1} parent=11 // pred_check
          %p228 = pneg %p89
        $region18: #{tpu_custom_call.1} parent=11 // pred_check_branch
          %230 = sbr.rel (%p228) target = $region20
        $region19: #{tpu_custom_call.1} parent=11 // pred_region
          _
        $region20: #{tpu_custom_call.1} parent=11 // pred_fallthru
          _
        // Predicated region
        $region21: #{tpu_custom_call.1} parent=11 // pred_check
          %p231 = pneg %p110
        $region22: #{tpu_custom_call.1} parent=11 // pred_check_branch
          %233 = sbr.rel (%p231) target = $region24
        $region23: #{tpu_custom_call.1} parent=11 // pred_region
          %235 = vsyncadd [#allocation6], 0
          %s236 = sshll.u32 %s3, 4
          %s237 = int_to_ptr.hbm [resolvable:$true] %s236
          %s238 = sshll.u32 [#allocation7], 4
          %s239 = int_to_ptr.vmem [resolvable:$true] %s238
          %244 = dma.hbm_to_vmem [thread:$0]  %s237, 1024, %s239, [#allocation6], 64, 64, 4
        $region24: #{tpu_custom_call.1} parent=11 // pred_fallthru
          _
        // Predicated region
        $region25: #{tpu_custom_call.1} parent=11 // pred_check
          %p245 = pneg %p131
        $region26: #{tpu_custom_call.1} parent=11 // pred_check_branch
          %247 = sbr.rel (%p245) target = $region28
        $region27: #{tpu_custom_call.1} parent=11 // pred_region
          _
        $region28: #{tpu_custom_call.1} parent=11 // pred_fallthru
          _
        // Predicated region
        $region29: #{tpu_custom_call.1} parent=11 // pred_check
          %p248 = pneg %p152
        $region30: #{tpu_custom_call.1} parent=11 // pred_check_branch
          %250 = sbr.rel (%p248) target = $region32
        $region31: #{tpu_custom_call.1} parent=11 // pred_region
          %252 = vsyncadd [#allocation9], 0
          %s253 = sshll.u32 %s5, 4
          %s254 = int_to_ptr.hbm [resolvable:$true] %s253
          %s255 = sshll.u32 [#allocation8], 4
          %s256 = int_to_ptr.vmem [resolvable:$true] %s255
          %261 = dma.hbm_to_vmem [thread:$0]  %s254, 1024, %s256, [#allocation9], 64, 64, 4
        $region32: #{tpu_custom_call.1} parent=11 // pred_fallthru
          _
        // Predicated region
        $region33: #{tpu_custom_call.1} parent=11 // pred_check
          %p262 = pneg %p173
        $region34: #{tpu_custom_call.1} parent=11 // pred_check_branch
          %264 = sbr.rel (%p262) target = $region36
        $region35: #{tpu_custom_call.1} parent=11 // pred_region
          _
        $region36: #{tpu_custom_call.1} parent=11 // pred_fallthru
          _
      $region12: #{tpu_custom_call.1} parent=5 // pred_fallthru
        _
      %p265 = scmp.lt.s32.totalorder %s21, 3
      // Predicated region
      $region37: #{tpu_custom_call.1} parent=5 // pred_check
        %p266 = pneg %p265
      $region38: #{tpu_custom_call.1} parent=5 // pred_check_branch
        %268 = sbr.rel (%p266) target = $region40
      $region39: #{tpu_custom_call.1} parent=5 // pred_region
        // Predicated region
        $region41: #{tpu_custom_call.1} parent=39 // pred_check
          %p269 = pneg %p41
        $region42: #{tpu_custom_call.1} parent=39 // pred_check_branch
          %271 = sbr.rel (%p269) target = $region44
        $region43: #{tpu_custom_call.1} parent=39 // pred_region
          %s272 = sand.u32 %s31, 1
          %s273 = scalar_lea.sflag [#allocation3], %s272
          %s274 = sand.u32 %s31, 1
          %s275 = smul.addr %s274, 32
          %s276 = scalar_lea.vmem [#allocation2], %s275
          %s277 = smul.u32 4, %s21
          %279 = vsyncadd %s273, 0
          %s280 = smul.addr %s277, 8
          %s281 = scalar_lea.hbm %s0, %s280
          %s282 = sshll.u32 %s281, 4
          %s283 = int_to_ptr.hbm [resolvable:$true] %s282
          %s284 = sshll.u32 %s276, 4
          %s285 = int_to_ptr.vmem [resolvable:$true] %s284
          %290 = dma.hbm_to_vmem [thread:$0]  %s283, 512, %s285, %s273, 128, 128, 8
        $region44: #{tpu_custom_call.1} parent=39 // pred_fallthru
          _
      $region40: #{tpu_custom_call.1} parent=5 // pred_fallthru
        _
      %p291 = scmp.le.s32.totalorder 1, %s21
      %p292 = scmp.lt.s32.totalorder %s21, 4
      %p293 = pnand %p291, %p292
      %p294 = pneg %p293
      // Predicated region
      $region45: #{tpu_custom_call.1} parent=5 // pred_check
        _
      $region46: #{tpu_custom_call.1} parent=5 // pred_check_branch
        %296 = sbr.rel (%p293) target = $region48
      $region47: #{tpu_custom_call.1} parent=5 // pred_region
        %s297 = ssub.s32 %s21, 1
        %s298 = sand.u32 %s34, 1
        %s299 = scalar_lea.sflag [#allocation3], %s298
        %s300 = sand.u32 %s34, 1
        %s301 = smul.addr %s300, 32
        %s302 = scalar_lea.vmem [#allocation2], %s301
        // Predicated region
        $region49: #{tpu_custom_call.1} parent=47 // pred_check
          %p303 = pneg %p47
        $region50: #{tpu_custom_call.1} parent=47 // pred_check_branch
          %305 = sbr.rel (%p303) target = $region52
        $region51: #{tpu_custom_call.1} parent=47 // pred_region
          %307 = dma.done %s299, 512
        $region52: #{tpu_custom_call.1} parent=47 // pred_fallthru
          _
        // Predicated region
        $region53: #{tpu_custom_call.1} parent=47 // pred_check
          %p308 = pneg %p68
        $region54: #{tpu_custom_call.1} parent=47 // pred_check_branch
          %310 = sbr.rel (%p308) target = $region56
        $region55: #{tpu_custom_call.1} parent=47 // pred_region
          %312 = dma.done [#allocation6], 1024
        $region56: #{tpu_custom_call.1} parent=47 // pred_fallthru
          _
        // Predicated region
        $region57: #{tpu_custom_call.1} parent=47 // pred_check
          %p313 = pneg %p110
        $region58: #{tpu_custom_call.1} parent=47 // pred_check_branch
          %315 = sbr.rel (%p313) target = $region60
        $region59: #{tpu_custom_call.1} parent=47 // pred_region
          %317 = dma.done [#allocation6], 1024
        $region60: #{tpu_custom_call.1} parent=47 // pred_fallthru
          _
        // Predicated region
        $region61: #{tpu_custom_call.1} parent=47 // pred_check
          %p318 = pneg %p152
        $region62: #{tpu_custom_call.1} parent=47 // pred_check_branch
          %320 = sbr.rel (%p318) target = $region64
        $region63: #{tpu_custom_call.1} parent=47 // pred_region
          %322 = dma.done [#allocation9], 1024
        $region64: #{tpu_custom_call.1} parent=47 // pred_fallthru
          _
        %s323 = sand.u32 %s34, 1
        %s324 = scalar_lea.sflag [#allocation3], %s323
        %s325 = sand.u32 %s34, 1
        %s326 = smul.addr %s325, 32
        %s327 = scalar_lea.vmem [#allocation2], %s326
        %p328 = pneg %p47
        %p329 = pneg %p44
        %p330 = pneg %p68
        %p331 = pneg %p65
        %p332 = pneg %p89
        %p333 = pneg %p86
        %p334 = pneg %p110
        %p335 = pneg %p107
        %p336 = pneg %p131
        %p337 = pneg %p128
        %p338 = pneg %p152
        %p339 = pneg %p149
        %p340 = pneg %p173
        %p341 = pneg %p170
        %p342 = pneg %p199
        %p343 = pneg %p196
        %s344 = sand.u32 %s186, 1
        %s345 = scalar_lea.sflag [#allocation4], %s344
        %s346 = sand.u32 %s186, 1
        %s347 = smul.addr %s346, 32
        %s348 = scalar_lea.vmem [#allocation10], %s347
        %s349 = smul.u32 4, %s26
        %s350 = smul.u32 4, %s26
        %v351 = vld [vmem:[%s302] sm:$0xff]
        %v352 = vld [vmem:[%s302 + $0x8] sm:$0xff]
        %v353 = vld [vmem:[%s302 + $0x10] sm:$0xff]
        %v354 = vld [vmem:[%s302 + $0x18] sm:$0xff]
        %v355 = vld [vmem:[#allocation5] sm:$0xf]
        %v356 = vld [vmem:[#allocation5 + $0x4] sm:$0xf]
        %v357 = vld [vmem:[#allocation5 + $0x8] sm:$0xf]
        %v358 = vld [vmem:[#allocation5 + $0xc] sm:$0xf]
        %v359 = vld [vmem:[#allocation5 + $0x10] sm:$0xf]
        %v360 = vld [vmem:[#allocation5 + $0x14] sm:$0xf]
        %v361 = vld [vmem:[#allocation5 + $0x18] sm:$0xf]
        %v362 = vld [vmem:[#allocation5 + $0x1c] sm:$0xf]
        %v363 = vld [vmem:[#allocation5 + $0x20] sm:$0xf]
        %v364 = vld [vmem:[#allocation5 + $0x24] sm:$0xf]
        %v365 = vld [vmem:[#allocation5 + $0x28] sm:$0xf]
        %v366 = vld [vmem:[#allocation5 + $0x2c] sm:$0xf]
        %v367 = vld [vmem:[#allocation5 + $0x30] sm:$0xf]
        %v368 = vld [vmem:[#allocation5 + $0x34] sm:$0xf]
        %v369 = vld [vmem:[#allocation5 + $0x38] sm:$0xf]
        %v370 = vld [vmem:[#allocation5 + $0x3c] sm:$0xf]
        %v371 = vld [vmem:[%s2] sm:$0x1]
        %v372 = vpack.c.bf16 %v352, %v351
        %v373 = vpack.c.bf16 %v354, %v353
        %v375 = vperm.slane %v371, 0
        %v393 = vunpack.c.l.b16 %v355
        %v394 = vunpack.c.l.b16 %v356
        %v395 = vunpack.c.l.b16 %v357
        %v396 = vunpack.c.l.b16 %v358
        %v397 = vunpack.c.l.b16 %v359
        %v398 = vunpack.c.l.b16 %v360
        %v399 = vunpack.c.l.b16 %v361
        %v400 = vunpack.c.l.b16 %v362
        %v401 = vunpack.c.l.b16 %v363
        %v402 = vunpack.c.l.b16 %v364
        %v403 = vunpack.c.l.b16 %v365
        %v404 = vunpack.c.l.b16 %v366
        %v405 = vunpack.c.l.b16 %v367
        %v406 = vunpack.c.l.b16 %v368
        %v407 = vunpack.c.l.b16 %v369
        %v408 = vunpack.c.l.b16 %v370
        %v409 = vpack.c.b16 %v394, %v393
        %v410 = vpack.c.b16 %v396, %v395
        %v411 = vpack.c.b16 %v398, %v397
        %v412 = vpack.c.b16 %v400, %v399
        %v413 = vpack.c.b16 %v402, %v401
        %v414 = vpack.c.b16 %v404, %v403
        %v415 = vpack.c.b16 %v406, %v405
        %v416 = vpack.c.b16 %v408, %v407
        %425 = vmatpush.bf16.msra.mxu0 %v416
        %426 = vmatpush.bf16.msra.mxu0 %v415
        %427 = vmatpush.bf16.msra.mxu0 %v414
        %428 = vmatpush.bf16.msra.mxu0 %v413
        %429 = vmatpush.bf16.msra.mxu0 %v412
        %430 = vmatpush.bf16.msra.mxu0 %v411
        %431 = vmatpush.bf16.msra.mxu0 %v410
        %432 = vmatpush.bf16.msra.mxu0 %v409
        %433 = vmatmul.bf16.gmra.mxu0 %v372
        %v434 = vpop.f32.mrf.mxu0
        %v435 = vadd.f32 %v375, %v434
        %v436 = vpop.f32.mrf.mxu0
        %v437 = vadd.f32 %v375, %v436
        %438 = vmatmul.bf16.gmra.mxu0 %v373
        %v439 = vpop.f32.mrf.mxu0
        %v440 = vadd.f32 %v375, %v439
        %v441 = vpop.f32.mrf.mxu0
        %v442 = vadd.f32 %v375, %v441
        %443 = vdwg.mxu0
        %v444 = vmax.f32 %v435, 0.0
        %v445 = vmax.f32 %v437, 0.0
        %v446 = vmax.f32 %v440, 0.0
        %v447 = vmax.f32 %v442, 0.0
        %v448 = vld [vmem:[#allocation7] sm:$0xf]
        %v449 = vld [vmem:[#allocation7 + $0x4] sm:$0xf]
        %v450 = vld [vmem:[#allocation7 + $0x8] sm:$0xf]
        %v451 = vld [vmem:[#allocation7 + $0xc] sm:$0xf]
        %v452 = vld [vmem:[#allocation7 + $0x10] sm:$0xf]
        %v453 = vld [vmem:[#allocation7 + $0x14] sm:$0xf]
        %v454 = vld [vmem:[#allocation7 + $0x18] sm:$0xf]
        %v455 = vld [vmem:[#allocation7 + $0x1c] sm:$0xf]
        %v456 = vld [vmem:[#allocation7 + $0x20] sm:$0xf]
        %v457 = vld [vmem:[#allocation7 + $0x24] sm:$0xf]
        %v458 = vld [vmem:[#allocation7 + $0x28] sm:$0xf]
        %v459 = vld [vmem:[#allocation7 + $0x2c] sm:$0xf]
        %v460 = vld [vmem:[#allocation7 + $0x30] sm:$0xf]
        %v461 = vld [vmem:[#allocation7 + $0x34] sm:$0xf]
        %v462 = vld [vmem:[#allocation7 + $0x38] sm:$0xf]
        %v463 = vld [vmem:[#allocation7 + $0x3c] sm:$0xf]
        %v464 = vld [vmem:[%s4] sm:$0x1]
        %v465 = vpack.c.bf16 %v445, %v444
        %v466 = vpack.c.bf16 %v447, %v446
        %v468 = vperm.slane %v464, 0
        %v486 = vunpack.c.l.b16 %v448
        %v487 = vunpack.c.l.b16 %v449
        %v488 = vunpack.c.l.b16 %v450
        %v489 = vunpack.c.l.b16 %v451
        %v490 = vunpack.c.l.b16 %v452
        %v491 = vunpack.c.l.b16 %v453
        %v492 = vunpack.c.l.b16 %v454
        %v493 = vunpack.c.l.b16 %v455
        %v494 = vunpack.c.l.b16 %v456
        %v495 = vunpack.c.l.b16 %v457
        %v496 = vunpack.c.l.b16 %v458
        %v497 = vunpack.c.l.b16 %v459
        %v498 = vunpack.c.l.b16 %v460
        %v499 = vunpack.c.l.b16 %v461
        %v500 = vunpack.c.l.b16 %v462
        %v501 = vunpack.c.l.b16 %v463
        %v502 = vpack.c.b16 %v487, %v486
        %v503 = vpack.c.b16 %v489, %v488
        %v504 = vpack.c.b16 %v491, %v490
        %v505 = vpack.c.b16 %v493, %v492
        %v506 = vpack.c.b16 %v495, %v494
        %v507 = vpack.c.b16 %v497, %v496
        %v508 = vpack.c.b16 %v499, %v498
        %v509 = vpack.c.b16 %v501, %v500
        %518 = vmatpush.bf16.msra.mxu0 %v509
        %519 = vmatpush.bf16.msra.mxu0 %v508
        %520 = vmatpush.bf16.msra.mxu0 %v507
        %521 = vmatpush.bf16.msra.mxu0 %v506
        %522 = vmatpush.bf16.msra.mxu0 %v505
        %523 = vmatpush.bf16.msra.mxu0 %v504
        %524 = vmatpush.bf16.msra.mxu0 %v503
        %525 = vmatpush.bf16.msra.mxu0 %v502
        %526 = vmatmul.bf16.gmra.mxu0 %v465
        %v527 = vpop.f32.mrf.mxu0
        %v528 = vadd.f32 %v468, %v527
        %v529 = vpop.f32.mrf.mxu0
        %v530 = vadd.f32 %v468, %v529
        %531 = vmatmul.bf16.gmra.mxu0 %v466
        %v532 = vpop.f32.mrf.mxu0
        %v533 = vadd.f32 %v468, %v532
        %v534 = vpop.f32.mrf.mxu0
        %v535 = vadd.f32 %v468, %v534
        %536 = vdwg.mxu0
        %v537 = vxor.u32 %v528, 2147483648
        %v538 = vxor.u32 %v530, 2147483648
        %v539 = vxor.u32 %v533, 2147483648
        %v540 = vxor.u32 %v535, 2147483648
        %v541 = vmul.f32 %v537, 1.442695
        %v542 = vpow.pop %v541
        %v543 = vmul.f32 %v538, 1.442695
        %v544 = vpow.pop %v543
        %v545 = vmul.f32 %v539, 1.442695
        %v546 = vpow.pop %v545
        %v547 = vmul.f32 %v540, 1.442695
        %v548 = vpow.pop %v547
        %v549 = vadd.f32 %v542, 1.0
        %v550 = vadd.f32 %v544, 1.0
        %v551 = vadd.f32 %v546, 1.0
        %v552 = vadd.f32 %v548, 1.0
        %v553 = vrcp.pop %v549
        %v554 = vmul.f32 %v549, %v553
        %v555 = vsub.f32 1.0, %v554
        %v556 = vmul.f32 %v553, %v555
        %v557 = vadd.f32 %v553, %v556
        %vm558 = vweird.f32 %v549
        %vm559 = vweird.f32 %v553
        %vm560 = vmor %vm558, %vm559
        %v561 = vsel %vm560, %v553, %v557
        %v562 = vand.u32 2147483647, %v549
        %vm563 = vcmp.eq.f32.partialorder %v562, 8.507059e+37
        %v564 = vand.u32 %v549, 2147483648
        %v565 = vor.u32 1.1754944e-38, %v564
        %v566 = vsel %vm563, %v565, %v561
        %v567 = vmul.f32 1.0, %v566
        %v568 = vrcp.pop %v550
        %v569 = vmul.f32 %v550, %v568
        %v570 = vsub.f32 1.0, %v569
        %v571 = vmul.f32 %v568, %v570
        %v572 = vadd.f32 %v568, %v571
        %vm573 = vweird.f32 %v550
        %vm574 = vweird.f32 %v568
        %vm575 = vmor %vm573, %vm574
        %v576 = vsel %vm575, %v568, %v572
        %v577 = vand.u32 2147483647, %v550
        %vm578 = vcmp.eq.f32.partialorder %v577, 8.507059e+37
        %v579 = vand.u32 %v550, 2147483648
        %v580 = vor.u32 1.1754944e-38, %v579
        %v581 = vsel %vm578, %v580, %v576
        %v582 = vmul.f32 1.0, %v581
        %v583 = vrcp.pop %v551
        %v584 = vmul.f32 %v551, %v583
        %v585 = vsub.f32 1.0, %v584
        %v586 = vmul.f32 %v583, %v585
        %v587 = vadd.f32 %v583, %v586
        %vm588 = vweird.f32 %v551
        %vm589 = vweird.f32 %v583
        %vm590 = vmor %vm588, %vm589
        %v591 = vsel %vm590, %v583, %v587
        %v592 = vand.u32 2147483647, %v551
        %vm593 = vcmp.eq.f32.partialorder %v592, 8.507059e+37
        %v594 = vand.u32 %v551, 2147483648
        %v595 = vor.u32 1.1754944e-38, %v594
        %v596 = vsel %vm593, %v595, %v591
        %v597 = vmul.f32 1.0, %v596
        %v598 = vrcp.pop %v552
        %v599 = vmul.f32 %v552, %v598
        %v600 = vsub.f32 1.0, %v599
        %v601 = vmul.f32 %v598, %v600
        %v602 = vadd.f32 %v598, %v601
        %vm603 = vweird.f32 %v552
        %vm604 = vweird.f32 %v598
        %vm605 = vmor %vm603, %vm604
        %v606 = vsel %vm605, %v598, %v602
        %v607 = vand.u32 2147483647, %v552
        %vm608 = vcmp.eq.f32.partialorder %v607, 8.507059e+37
        %v609 = vand.u32 %v552, 2147483648
        %v610 = vor.u32 1.1754944e-38, %v609
        %v611 = vsel %vm608, %v610, %v606
        %v612 = vmul.f32 1.0, %v611
        %v613 = vld [vmem:[#allocation8] sm:$0xf]
        %v614 = vld [vmem:[#allocation8 + $0x4] sm:$0xf]
        %v615 = vld [vmem:[#allocation8 + $0x8] sm:$0xf]
        %v616 = vld [vmem:[#allocation8 + $0xc] sm:$0xf]
        %v617 = vld [vmem:[#allocation8 + $0x10] sm:$0xf]
        %v618 = vld [vmem:[#allocation8 + $0x14] sm:$0xf]
        %v619 = vld [vmem:[#allocation8 + $0x18] sm:$0xf]
        %v620 = vld [vmem:[#allocation8 + $0x1c] sm:$0xf]
        %v621 = vld [vmem:[#allocation8 + $0x20] sm:$0xf]
        %v622 = vld [vmem:[#allocation8 + $0x24] sm:$0xf]
        %v623 = vld [vmem:[#allocation8 + $0x28] sm:$0xf]
        %v624 = vld [vmem:[#allocation8 + $0x2c] sm:$0xf]
        %v625 = vld [vmem:[#allocation8 + $0x30] sm:$0xf]
        %v626 = vld [vmem:[#allocation8 + $0x34] sm:$0xf]
        %v627 = vld [vmem:[#allocation8 + $0x38] sm:$0xf]
        %v628 = vld [vmem:[#allocation8 + $0x3c] sm:$0xf]
        %v629 = vld [vmem:[%s6] sm:$0x1]
        %v630 = vpack.c.bf16 %v582, %v567
        %v631 = vpack.c.bf16 %v612, %v597
        %v633 = vperm.slane %v629, 0
        %v651 = vunpack.c.l.b16 %v613
        %v652 = vunpack.c.l.b16 %v614
        %v653 = vunpack.c.l.b16 %v615
        %v654 = vunpack.c.l.b16 %v616
        %v655 = vunpack.c.l.b16 %v617
        %v656 = vunpack.c.l.b16 %v618
        %v657 = vunpack.c.l.b16 %v619
        %v658 = vunpack.c.l.b16 %v620
        %v659 = vunpack.c.l.b16 %v621
        %v660 = vunpack.c.l.b16 %v622
        %v661 = vunpack.c.l.b16 %v623
        %v662 = vunpack.c.l.b16 %v624
        %v663 = vunpack.c.l.b16 %v625
        %v664 = vunpack.c.l.b16 %v626
        %v665 = vunpack.c.l.b16 %v627
        %v666 = vunpack.c.l.b16 %v628
        %v667 = vpack.c.b16 %v652, %v651
        %v668 = vpack.c.b16 %v654, %v653
        %v669 = vpack.c.b16 %v656, %v655
        %v670 = vpack.c.b16 %v658, %v657
        %v671 = vpack.c.b16 %v660, %v659
        %v672 = vpack.c.b16 %v662, %v661
        %v673 = vpack.c.b16 %v664, %v663
        %v674 = vpack.c.b16 %v666, %v665
        %683 = vmatpush.bf16.msra.mxu0 %v674
        %684 = vmatpush.bf16.msra.mxu0 %v673
        %685 = vmatpush.bf16.msra.mxu0 %v672
        %686 = vmatpush.bf16.msra.mxu0 %v671
        %687 = vmatpush.bf16.msra.mxu0 %v670
        %688 = vmatpush.bf16.msra.mxu0 %v669
        %689 = vmatpush.bf16.msra.mxu0 %v668
        %690 = vmatpush.bf16.msra.mxu0 %v667
        %691 = vmatmul.bf16.gmra.mxu0 %v630
        %v692 = vpop.f32.mrf.mxu0
        %v693 = vadd.f32 %v633, %v692
        %v694 = vpop.f32.mrf.mxu0
        %v695 = vadd.f32 %v633, %v694
        %696 = vmatmul.bf16.gmra.mxu0 %v631
        %v697 = vpop.f32.mrf.mxu0
        %v698 = vadd.f32 %v633, %v697
        %v699 = vpop.f32.mrf.mxu0
        %v700 = vadd.f32 %v633, %v699
        %701 = vdwg.mxu0
        %702 = vst [vmem:[%s348] sm:$0xff] %v693
        %703 = vst [vmem:[%s348 + $0x8] sm:$0xff] %v695
        %704 = vst [vmem:[%s348 + $0x10] sm:$0xff] %v698
        %705 = vst [vmem:[%s348 + $0x18] sm:$0xff] %v700
        %s706 = sand.u32 %s186, 1
        %s707 = scalar_lea.sflag [#allocation4], %s706
        %s708 = sand.u32 %s186, 1
        %s709 = smul.addr %s708, 32
        %s710 = scalar_lea.vmem [#allocation10], %s709
        // Predicated region
        $region65: #{tpu_custom_call.1} parent=47 // pred_check
          %p711 = pneg %p196
        $region66: #{tpu_custom_call.1} parent=47 // pred_check_branch
          %713 = sbr.rel (%p711) target = $region68
        $region67: #{tpu_custom_call.1} parent=47 // pred_region
          %s714 = smul.u32 4, %s26
          %716 = vsyncadd %s707, 0
          %s717 = smul.addr %s714, 8
          %s718 = scalar_lea.hbm %s7, %s717
          %s719 = sshll.u32 %s710, 4
          %s720 = int_to_ptr.vmem [resolvable:$true] %s719
          %s721 = sshll.u32 %s718, 4
          %s722 = int_to_ptr.hbm [resolvable:$true] %s721
          %727 = dma.vmem_to_hbm [thread:$0]  %s720, 512, %s722, %s707, 128, 128, 8
        $region68: #{tpu_custom_call.1} parent=47 // pred_fallthru
          _
      $region48: #{tpu_custom_call.1} parent=5 // pred_fallthru
        _
      %p728 = scmp.le.s32.totalorder 2, %s21
      // Predicated region
      $region69: #{tpu_custom_call.1} parent=5 // pred_check
        %p729 = pneg %p728
      $region70: #{tpu_custom_call.1} parent=5 // pred_check_branch
        %731 = sbr.rel (%p729) target = $region72
      $region71: #{tpu_custom_call.1} parent=5 // pred_region
        %s732 = ssub.s32 %s21, 2
        // Predicated region
        $region73: #{tpu_custom_call.1} parent=71 // pred_check
          %p733 = pneg %p202
        $region74: #{tpu_custom_call.1} parent=71 // pred_check_branch
          %735 = sbr.rel (%p733) target = $region76
        $region75: #{tpu_custom_call.1} parent=71 // pred_region
          %s736 = sand.u32 %s187, 1
          %s737 = scalar_lea.sflag [#allocation4], %s736
          %s738 = sand.u32 %s187, 1
          %s739 = smul.addr %s738, 32
          %s740 = scalar_lea.vmem [#allocation10], %s739
          %742 = dma.done %s737, 512
        $region76: #{tpu_custom_call.1} parent=71 // pred_fallthru
          _
      $region72: #{tpu_custom_call.1} parent=5 // pred_fallthru
        _
    $region6: #{tpu_custom_call.1} parent=1 // loop_footer
      %s25 = sadd.s32 1, %s21
    $region7: #{tpu_custom_call.1} parent=1 // loop_footer_branch
      %20 = sbr.rel target = $region3
    $region8: #{tpu_custom_call.1} parent=1 // loop_exit
      _
    %743 = vsyncpa [#allocation3], 1
    %s744 = scalar_lea.sflag [#allocation3], 1
    %745 = vsyncpa %s744, 1
    %746 = vsyncpa [#allocation6], 1
    %747 = vsyncpa [#allocation9], 1
    %748 = vsyncpa [#allocation4], 1
    %s749 = scalar_lea.sflag [#allocation4], 1
    %750 = vsyncpa %s749, 1

</llo_original>
